<compile_context>
chip_gen: v6e
topology: v6e:2x2x1
jax: 0.10.0
libtpu: 0.0.40
codegen_flags: <defaults>
</compile_context>

<pallas_src>
import jax
import jax.numpy as jnp
from jax import lax
from jax.experimental import pallas as pl
from jax.experimental.pallas import tpu as pltpu


def _round_up(x: int, m: int) -> int:
    return (x + m - 1) // m * m


def _make_linear_kernel(tk: int, k_rem: int):
    """Build the (i, j, k) grid-step kernel for y = x @ w.T + b.

    x_ref: (tm, tk)  activation tile
    w_ref: (tn, tk)  weight tile in native PyTorch (out, in) layout
    b_ref: (1, tn)   bias tile (f32)
    o_ref: (tm, tn)  f32 output tile; doubles as the accumulator (resident across K)
    """

    def kernel(x_ref, w_ref, b_ref, o_ref):
        k = pl.program_id(2)

        x = x_ref[...]
        w = w_ref[...]

        if k_rem:  # static: only emitted when input_dim % tk != 0
            # Zero the ragged K tail on the last K block so garbage beyond
            # input_dim (possibly NaN) never reaches the contraction. On all
            # other K blocks the threshold is tk, i.e. keep everything.
            limit = jnp.where(k == pl.num_programs(2) - 1, k_rem, tk)
            col = lax.broadcasted_iota(jnp.int32, (1, tk), 1)
            keep = col < limit
            x = jnp.where(keep, x, jnp.zeros_like(x))
            w = jnp.where(keep, w, jnp.zeros_like(w))

        # Contract the last axis of BOTH operands (== x @ w.T); no weight transpose
        # is materialized — the MXU takes this operand order natively.
        part = lax.dot_general(
            x,
            w,
            dimension_numbers=(((1,), (1,)), ((), ())),
            preferred_element_type=jnp.float32,
        )

        @pl.when(k == 0)
        def _first():
            # First K step: initialize the resident output block with partial + bias.
            o_ref[...] = (part + b_ref[...]).astype(o_ref.dtype)

        @pl.when(k != 0)
        def _rest():
            o_ref[...] += part.astype(o_ref.dtype)

    return kernel


def logistic_regression_forward(x, weight, bias, *, tm=512, tn=512, tk=1024,
                                compute_dtype=None):
    """Forward pass of nn.Linear: y = x @ weight.T + bias.

    x:      (batch, input_dim)       float32
    weight: (output_dim, input_dim)  float32  (native PyTorch layout, NOT transposed)
    bias:   (output_dim,)            float32
    compute_dtype: optional matmul operand dtype (e.g. jnp.bfloat16); accumulation
                   stays f32 and the output dtype stays x.dtype.
    returns (batch, output_dim)      x.dtype
    """
    batch, input_dim = x.shape
    output_dim = weight.shape[0]
    out_dtype = x.dtype

    if compute_dtype is not None:
        # bf16 operands + f32 accumulation: biggest lever on the bf16-native MXUs
        # and halves HBM traffic in the bandwidth-bound regime.
        x = x.astype(compute_dtype)
        weight = weight.astype(compute_dtype)

    # Shrink tiles for small problems; keep (8, 128) alignment for the blocks
    # (the arrays themselves stay unpadded — Pallas masks ragged edge blocks).
    tm = min(tm, _round_up(batch, 8))
    tn = min(tn, _round_up(output_dim, 128))
    tk = min(tk, _round_up(input_dim, 128))

    # Megacore / v7x: if both parallel axes collapse to a single tile, split M so the
    # parallel grid has >= 2 steps and both TensorCores get work.
    if pl.cdiv(output_dim, tn) == 1 and pl.cdiv(batch, tm) == 1 and batch > 8:
        half = pl.cdiv(batch, 2)
        tm = _round_up(half, 256) if half >= 256 else _round_up(half, 8)

    k_rem = input_dim % tk
    grid = (pl.cdiv(batch, tm), pl.cdiv(output_dim, tn), pl.cdiv(input_dim, tk))

    b2d = bias.reshape(1, output_dim)  # keep bias in f32; added after f32 accumulation

    kernel = _make_linear_kernel(tk, k_rem)

    out = pl.pallas_call(
        kernel,
        out_shape=jax.ShapeDtypeStruct((batch, output_dim), out_dtype),
        grid_spec=pltpu.PrefetchScalarGridSpec(
            num_scalar_prefetch=0,
            grid=grid,
            in_specs=[
                pl.BlockSpec((tm, tk), lambda i, j, k: (i, k)),   # x tile
                pl.BlockSpec((tn, tk), lambda i, j, k: (j, k)),   # weight tile (native layout)
                pl.BlockSpec((1, tn), lambda i, j, k: (0, j)),    # bias tile (per-N)
            ],
            # Output block index ignores k -> stays resident in VMEM across the K
            # reduction and is used directly as the accumulator.
            out_specs=pl.BlockSpec((tm, tn), lambda i, j, k: (i, j)),
        ),
        compiler_params=pltpu.CompilerParams(
            # M/N parallel (megacore sharding), K is the sequential reduction.
            dimension_semantics=("parallel", "parallel", "arbitrary"),
            vmem_limit_bytes=32 * 1024 * 1024,
        ),
    )(x, weight, b2d)

    # TODO(synk): if profiling shows exposed DMA in the GEMV-like small-output_dim
    # regime, add pipeline_mode=pl.Buffered(3) to the x / weight BlockSpecs.
    return out


if __name__ == "__main__":
    # Small shapes consistent with nn.Linear(input_dim, output_dim).
    batch = 8
    input_dim = 32
    output_dim = 16

    key = jax.random.PRNGKey(0)
    kx, kw, kb = jax.random.split(key, 3)

    # Deterministic synthetic parameters (mimic PyTorch's uniform init range).
    bound = 1.0 / float(input_dim) ** 0.5
    weight = jax.random.uniform(kw, (output_dim, input_dim), jnp.float32,
                                minval=-bound, maxval=bound)
    bias = jax.random.uniform(kb, (output_dim,), jnp.float32,
                              minval=-bound, maxval=bound)
    x = jax.random.normal(kx, (batch, input_dim), jnp.float32)

    # Reference (same math as PyTorch nn.Linear).
    y_ref = x @ weight.T + bias

    # Default f32 path: exact nn.Linear semantics.
    y = jax.block_until_ready(logistic_regression_forward(x, weight, bias))
    assert y.shape == (batch, output_dim)
    assert jnp.allclose(y, y_ref, atol=1e-5, rtol=1e-5)

    # bf16-operand path (f32 accumulation) — the main perf lever; looser tolerance.
    y_bf16 = jax.block_until_ready(
        logistic_regression_forward(x, weight, bias, compute_dtype=jnp.bfloat16))
    assert jnp.allclose(y_bf16, y_ref, atol=2e-2, rtol=2e-2)

    print("KERNEL_OK")
</pallas_src>

<mosaic_0001>
module attributes {stable_mosaic.version = 11 : i64} {
  func.func @kernel(%arg0: i32, %arg1: i32, %arg2: i32, %arg3: memref<8x128xf32, #tpu.memory_space<vmem>>, %arg4: memref<128x128xf32, #tpu.memory_space<vmem>>, %arg5: memref<1x128xf32, #tpu.memory_space<vmem>>, %arg6: memref<8x128xf32, #tpu.memory_space<vmem>>) attributes {dimension_semantics = [#tpu.dimension_semantics<parallel>, #tpu.dimension_semantics<parallel>, #tpu.dimension_semantics<arbitrary>], iteration_bounds = array<i64: 1, 1, 1>, scalar_prefetch = 0 : i64, scratch_operands = 0 : i64, tpu.core_type = #tpu.core_type<tc>, window_params = [{transform_indices = @transform_0, window_bounds = array<i64: 8, 128>}, {transform_indices = @transform_1, window_bounds = array<i64: 128, 128>}, {transform_indices = @transform_2, window_bounds = array<i64: 1, 128>}, {transform_indices = @transform_3, window_bounds = array<i64: 8, 128>}]} {
    %c0 = arith.constant 0 : index
    %c0_0 = arith.constant 0 : index
    %0 = vector.load %arg3[%c0, %c0_0] : memref<8x128xf32, #tpu.memory_space<vmem>>, vector<8x128xf32>
    %c0_1 = arith.constant 0 : index
    %c0_2 = arith.constant 0 : index
    %1 = vector.load %arg4[%c0_1, %c0_2] : memref<128x128xf32, #tpu.memory_space<vmem>>, vector<128x128xf32>
    %c0_i32 = arith.constant 0 : i32
    %2 = arith.cmpi eq, %arg2, %c0_i32 : i32
    %c32_i32 = arith.constant 32 : i32
    %c128_i32 = arith.constant 128 : i32
    %3 = arith.select %2, %c32_i32, %c128_i32 : i32
    %4 = tpu.iota {dimensions = array<i32: 1>} : vector<1x128xi32>
    %5 = vector.broadcast %3 : i32 to vector<1x128xi32>
    %6 = arith.cmpi slt, %4, %5 : vector<1x128xi32>
    %cst = arith.constant 0.000000e+00 : f32
    %7 = vector.broadcast %cst : f32 to vector<8x128xf32>
    %8 = vector.shape_cast %6 : vector<1x128xi1> to vector<1x128xi1>
    %9 = vector.broadcast %8 : vector<1x128xi1> to vector<8x128xi1>
    %10 = arith.select %9, %0, %7 : vector<8x128xi1>, vector<8x128xf32>
    %cst_3 = arith.constant 0.000000e+00 : f32
    %11 = vector.broadcast %cst_3 : f32 to vector<128x128xf32>
    %12 = vector.shape_cast %6 : vector<1x128xi1> to vector<1x128xi1>
    %13 = vector.broadcast %12 : vector<1x128xi1> to vector<128x128xi1>
    %14 = arith.select %13, %1, %11 : vector<128x128xi1>, vector<128x128xf32>
    %cst_4 = arith.constant dense<0.000000e+00> : vector<8x128xf32>
    %15 = tpu.matmul %10, %14, %cst_4 {dimension_numbers = #tpu.dot_dimension_numbers<[1], [1], [0], [0], [0, 0, 1, 0], [], []>} : vector<8x128xf32>, vector<128x128xf32>, vector<8x128xf32> -> vector<8x128xf32>
    %c0_i32_5 = arith.constant 0 : i32
    %16 = arith.cmpi eq, %arg2, %c0_i32_5 : i32
    %17 = arith.extui %16 : i1 to i32
    %c0_i32_6 = arith.constant 0 : i32
    %18 = arith.cmpi ne, %17, %c0_i32_6 : i32
    scf.if %18 {
      %c0_9 = arith.constant 0 : index
      %c0_10 = arith.constant 0 : index
      %22 = vector.load %arg5[%c0_9, %c0_10] : memref<1x128xf32, #tpu.memory_space<vmem>>, vector<1x128xf32>
      %23 = vector.broadcast %22 : vector<1x128xf32> to vector<8x128xf32>
      %24 = arith.addf %15, %23 : vector<8x128xf32>
      %c0_11 = arith.constant 0 : index
      %c0_12 = arith.constant 0 : index
      %25 = vector.load %arg6[%c0_11, %c0_12] : memref<8x128xf32, #tpu.memory_space<vmem>>, vector<8x128xf32>
      tpu.vector_store %arg6[%c0_11, %c0_12], %24 {strides = array<i32>} : memref<8x128xf32, #tpu.memory_space<vmem>>, vector<8x128xf32>,
    } else {
    }
    %c0_i32_7 = arith.constant 0 : i32
    %19 = arith.cmpi ne, %arg2, %c0_i32_7 : i32
    %20 = arith.extui %19 : i1 to i32
    %c0_i32_8 = arith.constant 0 : i32
    %21 = arith.cmpi ne, %20, %c0_i32_8 : i32
    scf.if %21 {
      %c0_9 = arith.constant 0 : index
      %c0_10 = arith.constant 0 : index
      %22 = vector.load %arg6[%c0_9, %c0_10] : memref<8x128xf32, #tpu.memory_space<vmem>>, vector<8x128xf32>
      %23 = arith.addf %22, %15 : vector<8x128xf32>
      %c0_11 = arith.constant 0 : index
      %c0_12 = arith.constant 0 : index
      %24 = vector.load %arg6[%c0_11, %c0_12] : memref<8x128xf32, #tpu.memory_space<vmem>>, vector<8x128xf32>
      tpu.vector_store %arg6[%c0_11, %c0_12], %23 {strides = array<i32>} : memref<8x128xf32, #tpu.memory_space<vmem>>, vector<8x128xf32>,
    } else {
    }
    return
  }
  func.func @transform_0(%arg0: i32, %arg1: i32, %arg2: i32) -> (i32, i32) {
    %c0_i32 = arith.constant 0 : i32
    return %arg0, %arg2 : i32, i32
  }
  func.func @transform_1(%arg0: i32, %arg1: i32, %arg2: i32) -> (i32, i32) {
    %c0_i32 = arith.constant 0 : i32
    return %arg1, %arg2 : i32, i32
  }
  func.func @transform_2(%arg0: i32, %arg1: i32, %arg2: i32) -> (i32, i32) {
    %c0_i32 = arith.constant 0 : i32
    %c0_i32_0 = arith.constant 0 : i32
    return %c0_i32, %arg1 : i32, i32
  }
  func.func @transform_3(%arg0: i32, %arg1: i32, %arg2: i32) -> (i32, i32) {
    %c0_i32 = arith.constant 0 : i32
    return %arg0, %arg1 : i32, i32
  }
}

</mosaic_0001>

<llo_original>
// kernel: tpu_custom_call.1
$region0: #{tpu_custom_call.1}
  #allocation0 [shape = 'u32[]', space=smem, size = 0x4, offset = 0x4, fixed_abs, tag = 'smem constant byte address 0x4 - core index']
  #allocation1 [shape = 'u32[144,128]{1,0:T(1,128)}', space=vmem, size = 0x12000, scoped, tag = 'internal scratch']
  %s0 = inlined_call_operand.hbm [shape: f32[8,32], index: 0, kind: input, shape index: {}]
  %s1 = inlined_call_operand.hbm [shape: f32[16,32], index: 1, kind: input, shape index: {}]
  %s2 = inlined_call_operand.vmem [shape: f32[1,16], index: 2, kind: input, shape index: {}]
  %s3 = inlined_call_operand.hbm [shape: f32[8,16], index: 3, kind: output, shape index: {}]
  %s4 = sld [smem:[#allocation0]]
  $region38: #{tpu_custom_call.1} parent=0
    _
  %s6 = ssub.s32 1, %s4
  %s7 = scalar_select 0, %s6, %s4
  $region1: #{tpu_custom_call.1} parent=0
    #allocation2 [shape = 'u8[4096]{0}', space=vmem, size = 0x1000, scoped, tag = 'input window, operand 0, single buffered']
    #allocation3 [shape = 's32[1]{0}', space=sflag, size = 0x4, scoped, tag = 'scoped memory for tpu_custom_call.1']
    #allocation4 [shape = 's32[1]{0}', space=sflag, size = 0x4, scoped, tag = 'scoped memory for tpu_custom_call.1']
    #allocation5 [shape = 'u8[65536]{0}', space=vmem, size = 0x10000, scoped, tag = 'input window, operand 1, single buffered']
    #allocation6 [shape = 's32[1]{0}', space=sflag, size = 0x4, scoped, tag = 'scoped memory for tpu_custom_call.1']
    #allocation7 [shape = 'u8[4096]{0}', space=vmem, size = 0x1000, scoped, tag = 'output window, operand 0, single buffered']
    %8 = vsyncpa [#allocation3], 0
    %9 = vsyncpa [#allocation6], 0
    %10 = vsyncpa [#allocation4], 0
    // Predicated region
    $region2: #{tpu_custom_call.1} parent=1 // pred_check
      _
    $region3: #{tpu_custom_call.1} parent=1 // pred_check_branch
      %12 = sbr.rel (0) target = $region5
    $region4: #{tpu_custom_call.1} parent=1 // pred_region
      %s14 = ssub.s32 128, 128
      %15 = vsyncadd [#allocation3], %s14
      %s17 = sshll.u32 [#allocation2], 4
      %s18 = int_to_ptr.vmem [resolvable:$true] %s17
      %20 = dma.hbm_to_vmem [thread:$0]  %s0, 128, %s18, [#allocation3]
    $region5: #{tpu_custom_call.1} parent=1 // pred_fallthru
      _
    // Predicated region
    $region6: #{tpu_custom_call.1} parent=1 // pred_check
      _
    $region7: #{tpu_custom_call.1} parent=1 // pred_check_branch
      %22 = sbr.rel (0) target = $region9
    $region8: #{tpu_custom_call.1} parent=1 // pred_region
      %s24 = ssub.s32 2048, 256
      %25 = vsyncadd [#allocation6], %s24
      %s26 = sshll.u32 [#allocation5], 4
      %s27 = int_to_ptr.vmem [resolvable:$true] %s26
      %32 = dma.hbm_to_vmem [thread:$0]  %s1, 256, %s27, [#allocation6], 128, 128, 8
    $region9: #{tpu_custom_call.1} parent=1 // pred_fallthru
      _
    // Predicated region
    $region10: #{tpu_custom_call.1} parent=1 // pred_check
      _
    $region11: #{tpu_custom_call.1} parent=1 // pred_check_branch
      %34 = sbr.rel (0) target = $region13
    $region12: #{tpu_custom_call.1} parent=1 // pred_region
      _
    $region13: #{tpu_custom_call.1} parent=1 // pred_fallthru
      _
    // Predicated region
    $region14: #{tpu_custom_call.1} parent=1 // pred_check
      _
    $region15: #{tpu_custom_call.1} parent=1 // pred_check_branch
      %36 = sbr.rel (0) target = $region17
    $region16: #{tpu_custom_call.1} parent=1 // pred_region
      %37 = dma.done [#allocation3], 128
    $region17: #{tpu_custom_call.1} parent=1 // pred_fallthru
      _
    // Predicated region
    $region18: #{tpu_custom_call.1} parent=1 // pred_check
      _
    $region19: #{tpu_custom_call.1} parent=1 // pred_check_branch
      %39 = sbr.rel (0) target = $region21
    $region20: #{tpu_custom_call.1} parent=1 // pred_region
      %40 = dma.done [#allocation6], 2048
    $region21: #{tpu_custom_call.1} parent=1 // pred_fallthru
      _
    %v41 = vld [vmem:[#allocation2] sm:$0xff]
    %v42 = vld [vmem:[#allocation5] sm:$0xff]
    %v43 = vld [vmem:[#allocation5 + $0x8] sm:$0xff]
    %v44 = vld [vmem:[#allocation5 + $0x10] sm:$0xff]
    %v45 = vld [vmem:[#allocation5 + $0x18] sm:$0xff]
    %v46 = vld [vmem:[#allocation5 + $0x20] sm:$0xff]
    %v47 = vld [vmem:[#allocation5 + $0x28] sm:$0xff]
    %v48 = vld [vmem:[#allocation5 + $0x30] sm:$0xff]
    %v49 = vld [vmem:[#allocation5 + $0x38] sm:$0xff]
    %v50 = vld [vmem:[#allocation5 + $0x40] sm:$0xff]
    %v51 = vld [vmem:[#allocation5 + $0x48] sm:$0xff]
    %v52 = vld [vmem:[#allocation5 + $0x50] sm:$0xff]
    %v53 = vld [vmem:[#allocation5 + $0x58] sm:$0xff]
    %v54 = vld [vmem:[#allocation5 + $0x60] sm:$0xff]
    %v55 = vld [vmem:[#allocation5 + $0x68] sm:$0xff]
    %v56 = vld [vmem:[#allocation5 + $0x70] sm:$0xff]
    %v57 = vld [vmem:[#allocation5 + $0x78] sm:$0xff]
    %p58 = scmp.eq.s32.totalorder 0, 0
    %s59 = scalar_select %p58, 32, 128
    %v60 = vlaneseq
    %v61 = vand.u32 %v60, 127
    %v62 = vstv %s59
    %vm63 = vcmp.lt.s32.totalorder %v61, %v62
    %v64 = vsel %vm63, 1, 0
    %vm65 = vcmp.eq.s32.totalorder %v64, 1
    %v66 = vsel %vm65, %v41, 0.0
    %v67 = vsel %vm65, %v42, 0.0
    %v68 = vsel %vm65, %v43, 0.0
    %v69 = vsel %vm65, %v44, 0.0
    %v70 = vsel %vm65, %v45, 0.0
    %v71 = vsel %vm65, %v46, 0.0
    %v72 = vsel %vm65, %v47, 0.0
    %v73 = vsel %vm65, %v48, 0.0
    %v74 = vsel %vm65, %v49, 0.0
    %v75 = vsel %vm65, %v50, 0.0
    %v76 = vsel %vm65, %v51, 0.0
    %v77 = vsel %vm65, %v52, 0.0
    %v78 = vsel %vm65, %v53, 0.0
    %v79 = vsel %vm65, %v54, 0.0
    %v80 = vsel %vm65, %v55, 0.0
    %v81 = vsel %vm65, %v56, 0.0
    %v82 = vsel %vm65, %v57, 0.0
    %83 = vmatprep.subr.mxu0 0.0
    %84 = vmatpush1.xpose.msra.mxu0 %v82
    %85 = vmatprep.subr.mxu0 0.0
    %86 = vmatpush1.xpose.msra.mxu0 %v81
    %87 = vmatprep.subr.mxu0 0.0
    %88 = vmatpush1.xpose.msra.mxu0 %v80
    %89 = vmatprep.subr.mxu0 0.0
    %90 = vmatpush1.xpose.msra.mxu0 %v79
    %91 = vmatprep.subr.mxu0 0.0
    %92 = vmatpush1.xpose.msra.mxu0 %v78
    %93 = vmatprep.subr.mxu0 0.0
    %94 = vmatpush1.xpose.msra.mxu0 %v77
    %95 = vmatprep.subr.mxu0 0.0
    %96 = vmatpush1.xpose.msra.mxu0 %v76
    %97 = vmatprep.subr.mxu0 0.0
    %98 = vmatpush1.xpose.msra.mxu0 %v75
    %99 = vmatprep.subr.mxu0 0.0
    %100 = vmatpush1.xpose.msra.mxu0 %v74
    %101 = vmatprep.subr.mxu0 0.0
    %102 = vmatpush1.xpose.msra.mxu0 %v73
    %103 = vmatprep.subr.mxu0 0.0
    %104 = vmatpush1.xpose.msra.mxu0 %v72
    %105 = vmatprep.subr.mxu0 0.0
    %106 = vmatpush1.xpose.msra.mxu0 %v71
    %107 = vmatprep.subr.mxu0 0.0
    %108 = vmatpush1.xpose.msra.mxu0 %v70
    %109 = vmatprep.subr.mxu0 0.0
    %110 = vmatpush1.xpose.msra.mxu0 %v69
    %111 = vmatprep.subr.mxu0 0.0
    %112 = vmatpush1.xpose.msra.mxu0 %v68
    %113 = vmatprep.subr.mxu0 0.0
    %114 = vmatpush1.xpose.msra.mxu0 %v67
    %115 = vmatprep.subr.mxu0 0.0
    %116 = vmatpush2.xpose.msra.mxu0 0.0
    %117 = vmatprep.subr.mxu0 0.0
    %118 = vmatpush2.xpose.msra.mxu0 0.0
    %119 = vmatprep.subr.mxu0 0.0
    %120 = vmatpush2.xpose.msra.mxu0 0.0
    %121 = vmatprep.subr.mxu0 0.0
    %122 = vmatpush2.xpose.msra.mxu0 0.0
    %123 = vmatprep.subr.mxu0 0.0
    %124 = vmatpush2.xpose.msra.mxu0 0.0
    %125 = vmatprep.subr.mxu0 0.0
    %126 = vmatpush2.xpose.msra.mxu0 0.0
    %127 = vmatprep.subr.mxu0 0.0
    %128 = vmatpush2.xpose.msra.mxu0 0.0
    %129 = vmatprep.subr.mxu0 0.0
    %130 = vmatpush2.xpose.msra.mxu0 0.0
    %131 = vmatprep.subr.mxu0 0.0
    %132 = vmatpush2.xpose.msra.mxu0 0.0
    %133 = vmatprep.subr.mxu0 0.0
    %134 = vmatpush2.xpose.msra.mxu0 0.0
    %135 = vmatprep.subr.mxu0 0.0
    %136 = vmatpush2.xpose.msra.mxu0 0.0
    %137 = vmatprep.subr.mxu0 0.0
    %138 = vmatpush2.xpose.msra.mxu0 0.0
    %139 = vmatprep.subr.mxu0 0.0
    %140 = vmatpush2.xpose.msra.mxu0 0.0
    %141 = vmatprep.subr.mxu0 0.0
    %142 = vmatpush2.xpose.msra.mxu0 0.0
    %143 = vmatprep.subr.mxu0 0.0
    %144 = vmatpush2.xpose.msra.mxu0 0.0
    %145 = vmatprep.subr.mxu0 0.0
    %146 = vmatpush2.xpose.msra.mxu0 0.0
    %147 = vmatprep.mubr.f32.mxu0 0.0
    %148 = vmatmul.mubr.f32.gmra.mxu0 %v66
    %v149 = vpop.f32.mrf.mxu0
    %v150 = vadd.f32 0.0, %v149
    %v151 = vpop.f32.mrf.mxu0
    %152 = vdwg.mxu0
    // Predicated region
    $region22: #{tpu_custom_call.1} parent=1 // pred_check
      %p153 = pneg %p58
    $region23: #{tpu_custom_call.1} parent=1 // pred_check_branch
      %155 = sbr.rel (%p153) target = $region25
    $region24: #{tpu_custom_call.1} parent=1 // pred_region
      %v156 = vld [vmem:[%s2] sm:$0x1]
      %v158 = vlaneseq
      %v159 = vshrl.u32 %v158, 7
      %v160 = vsub.s32 0, %v159
      %v161 = vrot.slane %v156, %v160
      %v163 = vadd.f32 %v150, %v161
      %164 = vst [vmem:[#allocation7] sm:$0xff] %v163
    $region25: #{tpu_custom_call.1} parent=1 // pred_fallthru
      _
    %p165 = scmp.ne.s32.totalorder 0, 0
    // Predicated region
    $region26: #{tpu_custom_call.1} parent=1 // pred_check
      %p166 = pneg %p165
    $region27: #{tpu_custom_call.1} parent=1 // pred_check_branch
      %168 = sbr.rel (%p166) target = $region29
    $region28: #{tpu_custom_call.1} parent=1 // pred_region
      %v169 = vld [vmem:[#allocation7] sm:$0xff]
      %v170 = vadd.f32 %v169, %v150
      %171 = vst [vmem:[#allocation7] sm:$0xff] %v170
    $region29: #{tpu_custom_call.1} parent=1 // pred_fallthru
      _
    // Predicated region
    $region30: #{tpu_custom_call.1} parent=1 // pred_check
      _
    $region31: #{tpu_custom_call.1} parent=1 // pred_check_branch
      %173 = sbr.rel (0) target = $region33
    $region32: #{tpu_custom_call.1} parent=1 // pred_region
      %s175 = ssub.s32 128, 128
      %176 = vsyncadd [#allocation4], %s175
      %s178 = sshll.u32 [#allocation7], 4
      %s179 = int_to_ptr.vmem [resolvable:$true] %s178
      %181 = dma.vmem_to_hbm [thread:$0]  %s179, 128, %s3, [#allocation4]
    $region33: #{tpu_custom_call.1} parent=1 // pred_fallthru
      _
    // Predicated region
    $region34: #{tpu_custom_call.1} parent=1 // pred_check
      _
    $region35: #{tpu_custom_call.1} parent=1 // pred_check_branch
      %183 = sbr.rel (0) target = $region37
    $region36: #{tpu_custom_call.1} parent=1 // pred_region
      %184 = dma.done [#allocation4], 128
    $region37: #{tpu_custom_call.1} parent=1 // pred_fallthru
      _
    %185 = vsyncpa [#allocation3], 1
    %186 = vsyncpa [#allocation6], 1
    %187 = vsyncpa [#allocation4], 1

</llo_original>
